<compile_context>
chip_gen: v5e
topology: v5e:2x2
jax: 0.10.0
libtpu: 0.0.40
codegen_flags: <defaults>
</compile_context>

<pallas_src>
import functools

import jax
import jax.numpy as jnp
from jax.experimental import pallas as pl
from jax.experimental.pallas import tpu as pltpu

_LANES = 128


def _round_up(n, m):
    return ((n + m - 1) // m) * m


def _sublane_align(dtype):
    # Native sublane tiling: f32 -> 8 rows, bf16/f16 -> 16, int8 -> 32.
    return max(8, 32 // max(1, jnp.dtype(dtype).itemsize))


def _int_pow(base, n):
    """base**n for a static non-negative integer n, using only VPU multiplies."""
    if n == 0:
        return jnp.ones_like(base)
    result = None
    b = base
    while n:
        if n & 1:
            result = b if result is None else result * b
        n >>= 1
        if n:
            b = b * b
    return result


def _focal_elementwise(x, t, gamma, alpha):
    """Elementwise focal loss in f32 (x, t already f32)."""
    # Numerically stable BCE-with-logits (matches torch's implementation):
    #   bce = max(x, 0) - x*t + log1p(exp(-|x|))
    bce = jnp.maximum(x, 0.0) - x * t + jnp.log1p(jnp.exp(-jnp.abs(x)))
    logpt = -bce
    pt = jnp.exp(logpt)
    one_minus_pt = 1.0 - pt
    # (1 - pt)^gamma, specialized for integer gamma (e.g. gamma=2) to avoid the
    # extra EUP log+exp pair that jnp.power would add per element.
    if float(gamma).is_integer() and 0.0 <= gamma <= 8.0:
        w = _int_pow(one_minus_pt, int(gamma))
    else:
        w = jnp.exp(gamma * jnp.log1p(-pt))
    loss = -w * logpt
    if alpha is not None:
        loss = loss * (alpha * t + (1.0 - alpha) * (1.0 - t))
    return loss


def _focal_loss_kernel(x_ref, t_ref, o_ref, *, gamma, alpha, tile_rows,
                       rows_total, needs_mask):
    # Cast from the native (possibly narrow) dtype to f32 on-chip, so HBM
    # traffic stays at the input dtype width.
    x = x_ref[...].astype(jnp.float32)
    t = t_ref[...].astype(jnp.float32)
    loss = _focal_elementwise(x, t, gamma, alpha)

    def partial_sum(v):
        # (tile_rows, 128) -> (8, 128) vreg-shaped partial sum with VPU adds
        # only; the tiny cross-lane reduce is deferred to the wrapper.
        return v.reshape(tile_rows // 8, 8, _LANES).sum(axis=0)

    o_ref[0] = partial_sum(loss)

    if needs_mask:
        i = pl.program_id(0)

        @pl.when(i == pl.num_programs(0) - 1)
        def _():
            # Only the last grid block overhangs the (rows, 128) array: mask
            # the out-of-range rows and overwrite the partial sum.
            rows_valid = rows_total - i * tile_rows
            row = jax.lax.broadcasted_iota(jnp.int32, (tile_rows, _LANES), 0)
            o_ref[0] = partial_sum(jnp.where(row < rows_valid, loss, 0.0))


def focal_loss(outputs, targets, *, gamma=0.0, alpha=None, reduction="mean",
               tile_rows=4096):
    """Focal loss matching the PyTorch FocalLoss forward (reduction mean/sum)."""
    assert outputs.shape == targets.shape
    if reduction not in ("mean", "sum"):
        # TODO(synk): reduction='none' (full elementwise output) is not kernelized.
        raise NotImplementedError("only reduction='mean' or 'sum' supported")

    total = int(outputs.size)
    gamma = float(gamma)
    alpha = None if alpha is None else float(alpha)

    # Keep native dtypes; the f32 upcast happens inside the kernel per block
    # (this is `targets.type(outputs.type())` + torch's internal f32 math).
    x = outputs.reshape(-1)
    t = targets.reshape(-1)
    if t.dtype == jnp.bool_:
        t = t.astype(jnp.int8)  # bool blocks are awkward on TPU; int8 is fine.

    rows = total // _LANES
    main = rows * _LANES

    tail_sum = jnp.zeros((), jnp.float32)
    if main < total:
        # Sub-128-element ragged tail: plain JAX (reads < 128 elems, negligible).
        tail_sum = jnp.sum(
            _focal_elementwise(x[main:].astype(jnp.float32),
                               t[main:].astype(jnp.float32), gamma, alpha),
            dtype=jnp.float32)

    if rows == 0:
        s = tail_sum
    else:
        xm = (x if main == total else x[:main]).reshape(rows, _LANES)
        tm = (t if main == total else t[:main]).reshape(rows, _LANES)

        align = max(_sublane_align(xm.dtype), _sublane_align(tm.dtype))
        tr = min(int(tile_rows), _round_up(rows, align))
        tr = max(align, _round_up(tr, align))
        num_steps = -(-rows // tr)
        needs_mask = (rows % tr) != 0

        kernel = functools.partial(
            _focal_loss_kernel,
            gamma=gamma,
            alpha=alpha,
            tile_rows=tr,
            rows_total=rows,
            needs_mask=needs_mask,
        )

        partials = pl.pallas_call(
            kernel,
            out_shape=jax.ShapeDtypeStruct((num_steps, 8, _LANES), jnp.float32),
            grid=(num_steps,),
            in_specs=[
                pl.BlockSpec((tr, _LANES), lambda i: (i, 0)),
                pl.BlockSpec((tr, _LANES), lambda i: (i, 0)),
            ],
            out_specs=pl.BlockSpec((1, 8, _LANES), lambda i: (i, 0, 0)),
            compiler_params=pltpu.CompilerParams(
                # No carried state between grid steps -> fully parallel
                # (megacore shards the row chunks across TCs on v7x).
                dimension_semantics=("parallel",),
                # 4096x128 f32 tiles: ~8 MiB of double-buffered I/O plus
                # full-block elementwise temporaries; 48 MiB leaves headroom
                # and stays under v7x's 64 MiB physical per-TC VMEM.
                vmem_limit_bytes=48 * 1024 * 1024,
            ),
        )(xm, tm)

        s = jnp.sum(partials, dtype=jnp.float32) + tail_sum

    if reduction == "mean":
        return s / jnp.float32(total)
    return s


def focal_loss_ref(outputs, targets, *, gamma=2.0, alpha=0.25, reduction="mean"):
    """Pure-JAX reference of the PyTorch forward."""
    x = outputs.astype(jnp.float32)
    t = targets.astype(jnp.float32)
    bce = jnp.maximum(x, 0.0) - x * t + jnp.log1p(jnp.exp(-jnp.abs(x)))
    logpt = -bce
    pt = jnp.exp(logpt)
    loss = -jnp.power(1.0 - pt, gamma) * logpt
    if alpha is not None:
        loss = loss * (alpha * t + (1.0 - alpha) * (1.0 - t))
    if reduction == "mean":
        return jnp.mean(loss)
    return jnp.sum(loss)


if __name__ == "__main__":
    key = jax.random.PRNGKey(0)
    k1, k2, k3, k4, k5, k6 = jax.random.split(key, 6)

    # Test 1: small f32 shape (16x40 = 640 = 5 rows of 128): exercises the
    # overhanging last block + in-kernel row mask, gamma=2 integer fast path.
    out1 = jax.random.normal(k1, (16, 40), dtype=jnp.float32)
    tgt1 = jax.random.bernoulli(k2, 0.5, (16, 40)).astype(jnp.float32)
    got1 = jax.block_until_ready(focal_loss(out1, tgt1, gamma=2.0, alpha=0.25))
    want1 = focal_loss_ref(out1, tgt1, gamma=2.0, alpha=0.25)
    assert jnp.allclose(got1, want1, rtol=1e-5, atol=1e-6), (got1, want1)

    # Test 2: bf16 inputs (native-dtype / in-kernel cast path), two parallel
    # grid steps, non-integer gamma, alpha=None.
    out2 = jax.random.normal(k3, (64, 128), dtype=jnp.float32).astype(jnp.bfloat16)
    tgt2 = jax.random.bernoulli(k4, 0.5, (64, 128)).astype(jnp.bfloat16)
    got2 = jax.block_until_ready(
        focal_loss(out2, tgt2, gamma=1.5, alpha=None, tile_rows=32))
    want2 = focal_loss_ref(out2, tgt2, gamma=1.5, alpha=None)
    assert jnp.allclose(got2, want2, rtol=1e-4, atol=1e-6), (got2, want2)

    # Test 3: total not a multiple of 128 (7x37 = 259): kernel handles the two
    # full 128-lane rows, plain JAX handles the 3-element tail; reduction='sum'.
    out3 = jax.random.normal(k5, (7, 37), dtype=jnp.float32)
    tgt3 = jax.random.bernoulli(k6, 0.5, (7, 37)).astype(jnp.float32)
    got3 = jax.block_until_ready(
        focal_loss(out3, tgt3, gamma=2.0, alpha=0.25, reduction="sum"))
    want3 = focal_loss_ref(out3, tgt3, gamma=2.0, alpha=0.25, reduction="sum")
    assert jnp.allclose(got3, want3, rtol=1e-5, atol=1e-5), (got3, want3)

    print("KERNEL_OK")
</pallas_src>

<mosaic_0001>
module attributes {stable_mosaic.version = 11 : i64} {
  func.func @_focal_loss_kernel(%arg0: i32, %arg1: memref<8x128xf32, #tpu.memory_space<vmem>>, %arg2: memref<8x128xf32, #tpu.memory_space<vmem>>, %arg3: memref<1x8x128xf32, #tpu.memory_space<vmem>>) attributes {dimension_semantics = [#tpu.dimension_semantics<parallel>], iteration_bounds = array<i64: 1>, scalar_prefetch = 0 : i64, scratch_operands = 0 : i64, tpu.core_type = #tpu.core_type<tc>, window_params = [{transform_indices = @transform_0, window_bounds = array<i64: 8, 128>}, {transform_indices = @transform_1, window_bounds = array<i64: 8, 128>}, {transform_indices = @transform_2, window_bounds = array<i64: 1, 8, 128>}]} {
    %c0 = arith.constant 0 : index
    %c0_0 = arith.constant 0 : index
    %0 = vector.load %arg1[%c0, %c0_0] : memref<8x128xf32, #tpu.memory_space<vmem>>, vector<8x128xf32>
    %c0_1 = arith.constant 0 : index
    %c0_2 = arith.constant 0 : index
    %1 = vector.load %arg2[%c0_1, %c0_2] : memref<8x128xf32, #tpu.memory_space<vmem>>, vector<8x128xf32>
    %cst = arith.constant 0.000000e+00 : f32
    %2 = vector.broadcast %cst : f32 to vector<8x128xf32>
    %3 = arith.maximumf %0, %2 : vector<8x128xf32>
    %4 = arith.mulf %0, %1 : vector<8x128xf32>
    %5 = arith.subf %3, %4 : vector<8x128xf32>
    %6 = math.absf %0 : vector<8x128xf32>
    %cst_3 = arith.constant 0.000000e+00 : f32
    %7 = vector.broadcast %cst_3 : f32 to vector<8x128xf32>
    %8 = arith.subf %7, %6 : vector<8x128xf32>
    %9 = math.exp %8 : vector<8x128xf32>
    %10 = math.log1p %9 : vector<8x128xf32>
    %11 = arith.addf %5, %10 : vector<8x128xf32>
    %cst_4 = arith.constant 0.000000e+00 : f32
    %12 = vector.broadcast %cst_4 : f32 to vector<8x128xf32>
    %13 = arith.subf %12, %11 : vector<8x128xf32>
    %14 = math.exp %13 : vector<8x128xf32>
    %cst_5 = arith.constant 1.000000e+00 : f32
    %15 = vector.broadcast %cst_5 : f32 to vector<8x128xf32>
    %16 = arith.subf %15, %14 : vector<8x128xf32>
    %17 = arith.mulf %16, %16 : vector<8x128xf32>
    %cst_6 = arith.constant 0.000000e+00 : f32
    %18 = vector.broadcast %cst_6 : f32 to vector<8x128xf32>
    %19 = arith.subf %18, %17 : vector<8x128xf32>
    %20 = arith.mulf %19, %13 : vector<8x128xf32>
    %cst_7 = arith.constant 2.500000e-01 : f32
    %21 = vector.broadcast %cst_7 : f32 to vector<8x128xf32>
    %22 = arith.mulf %21, %1 : vector<8x128xf32>
    %cst_8 = arith.constant 1.000000e+00 : f32
    %23 = vector.broadcast %cst_8 : f32 to vector<8x128xf32>
    %24 = arith.subf %23, %1 : vector<8x128xf32>
    %cst_9 = arith.constant 7.500000e-01 : f32
    %25 = vector.broadcast %cst_9 : f32 to vector<8x128xf32>
    %26 = arith.mulf %25, %24 : vector<8x128xf32>
    %27 = arith.addf %22, %26 : vector<8x128xf32>
    %28 = arith.mulf %20, %27 : vector<8x128xf32>
    %29 = vector.shape_cast %28 : vector<8x128xf32> to vector<1x8x128xf32>
    %cst_10 = arith.constant dense<0.000000e+00> : vector<8x128xf32>
    %30 = vector.multi_reduction <add>, %29, %cst_10 [0] : vector<1x8x128xf32> to vector<8x128xf32>
    %c0_11 = arith.constant 0 : index
    %c0_12 = arith.constant 0 : index
    %c0_13 = arith.constant 0 : index
    %31 = vector.load %arg3[%c0_11, %c0_12, %c0_13] : memref<1x8x128xf32, #tpu.memory_space<vmem>>, vector<1x8x128xf32>
    %32 = vector.shape_cast %31 : vector<1x8x128xf32> to vector<8x128xf32>
    %33 = vector.shape_cast %30 : vector<8x128xf32> to vector<1x8x128xf32>
    tpu.vector_store %arg3[%c0_11, %c0_12, %c0_13], %33 {strides = array<i32>} : memref<1x8x128xf32, #tpu.memory_space<vmem>>, vector<1x8x128xf32>,
    %c0_i32 = arith.constant 0 : i32
    %34 = arith.cmpi eq, %arg0, %c0_i32 : i32
    %35 = arith.extui %34 : i1 to i32
    %c0_i32_14 = arith.constant 0 : i32
    %36 = arith.cmpi ne, %35, %c0_i32_14 : i32
    scf.if %36 {
      %c8_i32 = arith.constant 8 : i32
      %37 = arith.muli %arg0, %c8_i32 : i32
      %c5_i32 = arith.constant 5 : i32
      %38 = arith.subi %c5_i32, %37 : i32
      %39 = tpu.iota {dimensions = array<i32: 0>} : vector<8x128xi32>
      %40 = vector.broadcast %38 : i32 to vector<8x128xi32>
      %41 = arith.cmpi slt, %39, %40 : vector<8x128xi32>
      %cst_15 = arith.constant 0.000000e+00 : f32
      %42 = vector.broadcast %cst_15 : f32 to vector<8x128xf32>
      %43 = arith.select %41, %28, %42 : vector<8x128xi1>, vector<8x128xf32>
      %44 = vector.shape_cast %43 : vector<8x128xf32> to vector<1x8x128xf32>
      %cst_16 = arith.constant dense<0.000000e+00> : vector<8x128xf32>
      %45 = vector.multi_reduction <add>, %44, %cst_16 [0] : vector<1x8x128xf32> to vector<8x128xf32>
      %c0_17 = arith.constant 0 : index
      %c0_18 = arith.constant 0 : index
      %c0_19 = arith.constant 0 : index
      %46 = vector.load %arg3[%c0_17, %c0_18, %c0_19] : memref<1x8x128xf32, #tpu.memory_space<vmem>>, vector<1x8x128xf32>
      %47 = vector.shape_cast %46 : vector<1x8x128xf32> to vector<8x128xf32>
      %48 = vector.shape_cast %45 : vector<8x128xf32> to vector<1x8x128xf32>
      tpu.vector_store %arg3[%c0_17, %c0_18, %c0_19], %48 {strides = array<i32>} : memref<1x8x128xf32, #tpu.memory_space<vmem>>, vector<1x8x128xf32>,
    } else {
    }
    return
  }
  func.func @transform_0(%arg0: i32) -> (i32, i32) {
    %c0_i32 = arith.constant 0 : i32
    %c0_i32_0 = arith.constant 0 : i32
    return %arg0, %c0_i32 : i32, i32
  }
  func.func @transform_1(%arg0: i32) -> (i32, i32) {
    %c0_i32 = arith.constant 0 : i32
    %c0_i32_0 = arith.constant 0 : i32
    return %arg0, %c0_i32 : i32, i32
  }
  func.func @transform_2(%arg0: i32) -> (i32, i32, i32) {
    %c0_i32 = arith.constant 0 : i32
    %c0_i32_0 = arith.constant 0 : i32
    %c0_i32_1 = arith.constant 0 : i32
    return %arg0, %c0_i32, %c0_i32_0 : i32, i32, i32
  }
}

</mosaic_0001>

<llo_original>
// kernel: tpu_custom_call.1
$region0: #{tpu_custom_call.1}
  #allocation0 [shape = 'u32[]', space=smem, size = 0x4, offset = 0x4, fixed_abs, tag = 'smem constant byte address 0x4 - core index']
  #allocation1 [shape = 'u32[72,128]{1,0:T(1,128)}', space=vmem, size = 0x9000, scoped, tag = 'internal scratch']
  %s0 = inlined_call_operand.hbm [shape: f32[5,128], index: 0, kind: input, shape index: {}]
  %s1 = inlined_call_operand.hbm [shape: f32[5,128], index: 1, kind: input, shape index: {}]
  %s2 = inlined_call_operand.hbm [shape: f32[1,8,128], index: 2, kind: output, shape index: {}]
  %s3 = sld [smem:[#allocation0]]
  $region30: #{tpu_custom_call.1} parent=0
    _
  %s5 = ssub.s32 1, %s3
  %s6 = scalar_select 0, %s5, %s3
  $region1: #{tpu_custom_call.1} parent=0
    #allocation2 [shape = 'u8[4096]{0}', space=vmem, size = 0x1000, scoped, tag = 'input window, operand 0, single buffered']
    #allocation3 [shape = 's32[1]{0}', space=sflag, size = 0x4, scoped, tag = 'scoped memory for tpu_custom_call.1']
    #allocation4 [shape = 's32[1]{0}', space=sflag, size = 0x4, scoped, tag = 'scoped memory for tpu_custom_call.1']
    #allocation5 [shape = 'u8[4096]{0}', space=vmem, size = 0x1000, scoped, tag = 'input window, operand 1, single buffered']
    #allocation6 [shape = 's32[1]{0}', space=sflag, size = 0x4, scoped, tag = 'scoped memory for tpu_custom_call.1']
    #allocation7 [shape = 'u8[4096]{0}', space=vmem, size = 0x1000, scoped, tag = 'output window, operand 0, single buffered']
    %7 = vsyncpa [#allocation3], 0
    %8 = vsyncpa [#allocation6], 0
    %9 = vsyncpa [#allocation4], 0
    // Predicated region
    $region2: #{tpu_custom_call.1} parent=1 // pred_check
      _
    $region3: #{tpu_custom_call.1} parent=1 // pred_check_branch
      %11 = sbr.rel (0) target = $region5
    $region4: #{tpu_custom_call.1} parent=1 // pred_region
      %13 = vsyncadd [#allocation3], 0
      %s15 = sshll.u32 %s0, 4
      %s16 = int_to_ptr.hbm [resolvable:$true] %s15
      %s17 = sshll.u32 [#allocation2], 4
      %s18 = int_to_ptr.vmem [resolvable:$true] %s17
      %20 = dma.hbm_to_vmem [thread:$0]  %s16, 128, %s18, [#allocation3]
    $region5: #{tpu_custom_call.1} parent=1 // pred_fallthru
      _
    // Predicated region
    $region6: #{tpu_custom_call.1} parent=1 // pred_check
      _
    $region7: #{tpu_custom_call.1} parent=1 // pred_check_branch
      %22 = sbr.rel (0) target = $region9
    $region8: #{tpu_custom_call.1} parent=1 // pred_region
      %24 = vsyncadd [#allocation6], 0
      %s26 = sshll.u32 %s1, 4
      %s27 = int_to_ptr.hbm [resolvable:$true] %s26
      %s28 = sshll.u32 [#allocation5], 4
      %s29 = int_to_ptr.vmem [resolvable:$true] %s28
      %31 = dma.hbm_to_vmem [thread:$0]  %s27, 128, %s29, [#allocation6]
    $region9: #{tpu_custom_call.1} parent=1 // pred_fallthru
      _
    // Predicated region
    $region10: #{tpu_custom_call.1} parent=1 // pred_check
      _
    $region11: #{tpu_custom_call.1} parent=1 // pred_check_branch
      %33 = sbr.rel (0) target = $region13
    $region12: #{tpu_custom_call.1} parent=1 // pred_region
      %35 = dma.done [#allocation3], 128
    $region13: #{tpu_custom_call.1} parent=1 // pred_fallthru
      _
    // Predicated region
    $region14: #{tpu_custom_call.1} parent=1 // pred_check
      _
    $region15: #{tpu_custom_call.1} parent=1 // pred_check_branch
      %37 = sbr.rel (0) target = $region17
    $region16: #{tpu_custom_call.1} parent=1 // pred_region
      %39 = dma.done [#allocation6], 128
    $region17: #{tpu_custom_call.1} parent=1 // pred_fallthru
      _
    %v40 = vld [vmem:[#allocation2] sm:$0xff]
    %v41 = vld [vmem:[#allocation5] sm:$0xff]
    %v42 = vmax.f32 %v40, 0.0
    %v43 = vmul.f32 %v40, %v41
    %v44 = vsub.f32 %v42, %v43
    %v45 = vand.u32 2147483647, %v40
    %v46 = vsub.f32 0.0, %v45
    %v47 = vmul.f32 %v46, 1.442695
    %v48 = vpow.pop %v47
    %v49 = vadd.f32 %v48, 1.0
    %v50 = vlog2.pop %v49
    %v51 = vmul.f32 %v50, 0.6931472
    %v52 = vmul.f32 -0.5, %v48
    %v53 = vadd.f32 %v52, 1.0
    %v54 = vmul.f32 %v53, %v48
    %v55 = vand.u32 2147483647, %v48
    %vm56 = vcmp.lt.f32.partialorder %v55, 0.0004427343
    %v57 = vsel %vm56, %v54, %v51
    %v58 = vadd.f32 %v44, %v57
    %v59 = vsub.f32 0.0, %v58
    %v60 = vmul.f32 %v59, 1.442695
    %v61 = vpow.pop %v60
    %v62 = vsub.f32 1.0, %v61
    %v63 = vmul.f32 %v62, %v62
    %v64 = vsub.f32 0.0, %v63
    %v65 = vmul.f32 %v64, %v59
    %v66 = vmul.f32 %v41, 0.25
    %v67 = vsub.f32 1.0, %v41
    %v68 = vmul.f32 %v67, 0.75
    %v69 = vadd.f32 %v66, %v68
    %v70 = vmul.f32 %v65, %v69
    %v71 = vadd.f32 %v70, 0.0
    %72 = vst [vmem:[#allocation7] sm:$0xff] %v71
    %p73 = scmp.eq.s32.totalorder 0, 0
    // Predicated region
    $region18: #{tpu_custom_call.1} parent=1 // pred_check
      %p74 = pneg %p73
    $region19: #{tpu_custom_call.1} parent=1 // pred_check_branch
      %76 = sbr.rel (%p74) target = $region21
    $region20: #{tpu_custom_call.1} parent=1 // pred_region
      %s77 = smul.u32 0, 8
      %s78 = ssub.s32 5, %s77
      %v79 = vlaneseq
      %v80 = vshrl.u32 %v79, 7
      %v81 = vstv %s78
      %vm82 = vcmp.lt.s32.totalorder %v80, %v81
      %v83 = vsel %vm82, %v70, 0.0
      %v84 = vadd.f32 %v83, 0.0
      %85 = vst [vmem:[#allocation7] sm:$0xff] %v84
    $region21: #{tpu_custom_call.1} parent=1 // pred_fallthru
      _
    // Predicated region
    $region22: #{tpu_custom_call.1} parent=1 // pred_check
      _
    $region23: #{tpu_custom_call.1} parent=1 // pred_check_branch
      %87 = sbr.rel (0) target = $region25
    $region24: #{tpu_custom_call.1} parent=1 // pred_region
      %89 = vsyncadd [#allocation4], 0
      %s91 = sshll.u32 [#allocation7], 4
      %s92 = int_to_ptr.vmem [resolvable:$true] %s91
      %s93 = sshll.u32 %s2, 4
      %s94 = int_to_ptr.hbm [resolvable:$true] %s93
      %96 = dma.vmem_to_hbm [thread:$0]  %s92, 128, %s94, [#allocation4]
    $region25: #{tpu_custom_call.1} parent=1 // pred_fallthru
      _
    // Predicated region
    $region26: #{tpu_custom_call.1} parent=1 // pred_check
      _
    $region27: #{tpu_custom_call.1} parent=1 // pred_check_branch
      %98 = sbr.rel (0) target = $region29
    $region28: #{tpu_custom_call.1} parent=1 // pred_region
      %100 = dma.done [#allocation4], 128
    $region29: #{tpu_custom_call.1} parent=1 // pred_fallthru
      _
    %101 = vsyncpa [#allocation3], 1
    %102 = vsyncpa [#allocation6], 1
    %103 = vsyncpa [#allocation4], 1

</llo_original>
